<compile_context>
chip_gen: v7x
topology: tpu7x:2x2x1
jax: 0.10.0
libtpu: 0.0.40
codegen_flags: <defaults>
</compile_context>

<pallas_src>
import math

import jax
import jax.numpy as jnp
from jax import lax
from jax.experimental import pallas as pl
from jax.experimental.pallas import tpu as pltpu

d_k = d_v = 32

_LANE = 128
_SUBLANE = 8


def _round_up(x, m):
    return ((x + m - 1) // m) * m


def _attention_kernel(q_ref, kt_ref, v_ref, ctx_ref, attn_ref):
    # q_ref: (G, tq, Dk)   kt_ref: (G, Dk, S_k)   v_ref: (G, S_k, Dv)
    # ctx_ref: (1, tq, G*Dv)   attn_ref: (G, tq, S_k)
    q = q_ref[...]
    kt = kt_ref[...]
    v = v_ref[...]

    # scores[g, q, s] = sum_d q[g, q, d] * k^T[g, d, s] -- per-head (M,K)x(K,N)
    # on the MXU with f32 accumulation; K is pre-transposed in the wrapper so
    # this block is lane-dense (S_k on the lane axis).
    scores = lax.dot_general(
        q, kt,
        dimension_numbers=(((2,), (1,)), ((0,), (0,))),
        preferred_element_type=jnp.float32,
    )  # (G, tq, S_k), f32

    # Scale the f32 scores (not Q): exact parity with the torch reference even
    # for low-precision inputs; one VPU mul, VALU is not the binding slot.
    scores = scores * (1.0 / math.sqrt(d_k))

    # Numerically stable softmax over the last axis, in f32.
    m = jnp.max(scores, axis=-1, keepdims=True)
    e = jnp.exp(scores - m)
    denom = jnp.sum(e, axis=-1, keepdims=True)
    attn = e * pl.reciprocal(denom, approx=False)   # exact parity with reference

    # attn writeback dominates HBM traffic; last dim is the full S_k so the
    # stores stay lane-dense / unmasked.
    attn_ref[...] = attn.astype(attn_ref.dtype)

    # context[g, q, d] = sum_s attn[g, q, s] * v[g, s, d]  -- MXU, f32 acc.
    ctx = lax.dot_general(
        attn.astype(v.dtype), v,
        dimension_numbers=(((2,), (1,)), ((0,), (0,))),
        preferred_element_type=jnp.float32,
    )  # (G, tq, Dv), f32

    # Lane-dense ctx slab: one fused transpose+reshape (G,tq,Dv) -> (tq,G*Dv)
    # instead of per-head slicing + concatenate.
    G, tq, Dv = ctx.shape
    ctx_ref[0] = jnp.swapaxes(ctx, 0, 1).reshape(tq, G * Dv).astype(ctx_ref.dtype)


def _vmem_budgets():
    """Generation-aware VMEM budgets (v5e/v6e: 128 MiB/TC; v7x: 64 MiB/TC)."""
    mib = 1024 * 1024
    try:
        phys = pltpu.get_tpu_info().vmem_capacity_bytes
    except Exception:
        phys = 64 * mib                       # conservative (v7x-class) fallback
    if phys >= 128 * mib:                     # v5e / v6e
        return {"vmem_limit": 64 * mib, "step": 40 * mib, "kv": 16 * mib}
    return {"vmem_limit": 36 * mib, "step": 26 * mib, "kv": 8 * mib}


def _choose_group(bh, dv, s_k, dk, itemsize, kv_budget):
    """Heads per grid step: aim for a 128-lane ctx slab, divide BH, fit VMEM."""
    target = 1
    if dv < _LANE and _LANE % dv == 0:
        target = _LANE // dv                   # e.g. Dv=32 -> 4 heads
    g = math.gcd(bh, target)                   # power of two, divides BH
    dv_pad = _round_up(dv, _LANE)              # V minor dim is lane-padded in VMEM
    s_k_lane = _round_up(s_k, _LANE)
    s_k_sub = _round_up(s_k, _SUBLANE)

    def kv_bytes(g_):
        # Double-buffered K^T (lane-dense) + V (lane-padded) resident blocks.
        return 2 * g_ * (dk * s_k_lane + s_k_sub * dv_pad) * itemsize

    while g > 1 and kv_bytes(g) > kv_budget:
        g //= 2
    return max(g, 1)


def _choose_q_tile(s_q, s_k, g, dk, dv, itemsize, step_budget):
    """Query tile: prefer big 128-aligned tiles; count f32 temps + lane padding."""
    dk_pad = _round_up(dk, _LANE)
    dv_pad = _round_up(dv, _LANE)
    s_k_lane = _round_up(s_k, _LANE)
    s_k_sub = _round_up(s_k, _SUBLANE)
    gdv = _round_up(g * dv, _LANE)

    def step_bytes(tq):
        q_in = 2 * g * tq * dk_pad * itemsize                       # Q block
        kt_in = 2 * g * _round_up(dk, _SUBLANE) * s_k_lane * itemsize
        v_in = 2 * g * s_k_sub * dv_pad * itemsize                  # V block
        ctx_o = 2 * tq * gdv * itemsize
        attn_o = 2 * g * tq * s_k_lane * itemsize
        # In-kernel f32 intermediates: scores, exp, normalized attn (pre-cast),
        # plus f32 ctx accumulator and its repacked slab.
        temps = 3 * g * tq * s_k_lane * 4 + 2 * g * tq * dv_pad * 4
        return q_in + kt_in + v_in + ctx_o + attn_o + temps

    cap = _round_up(s_q, _SUBLANE)
    if cap < _LANE:
        return cap                            # tiny S_q: one minimally padded tile

    candidates = [t for t in (512, 256, 128) if t <= cap]
    fitting = [t for t in candidates if step_bytes(t) <= step_budget]
    if fitting:
        # Minimize padded S_q; among ties prefer the largest tile.
        return min(fitting, key=lambda t: (_round_up(s_q, t), -t))
    # Nothing >=128 fits (very long S_k with G already minimal): degrade rather
    # than fail.  TODO(synk): tile S_k with an online-softmax accumulator.
    for t in (64, 32, 16, 8):
        if step_bytes(t) <= step_budget:
            return t
    return 8


def scaled_dot_product_attention(Q, K, V):
    """Q: [B, H, S_q, d_k], K: [B, H, S_k, d_k], V: [B, H, S_k, d_v].

    Returns (context [B, H, S_q, d_v], attn [B, H, S_q, S_k]),
    matching torch: softmax(Q @ K^T / sqrt(d_k)) @ V.
    """
    B, H, S_q, Dk = Q.shape
    S_k = K.shape[2]
    Dv = V.shape[-1]
    BH = B * H
    itemsize = jnp.dtype(Q.dtype).itemsize
    budgets = _vmem_budgets()

    q = Q.reshape(BH, S_q, Dk)
    # Pre-transpose K so the resident K block is (G, Dk, S_k): the large S_k
    # sits on the lane axis (no 4x lane padding of a 32-wide minor dim).
    kt = jnp.swapaxes(K.reshape(BH, S_k, Dk), 1, 2)
    v = V.reshape(BH, S_k, Dv)

    G = _choose_group(BH, Dv, S_k, Dk, itemsize, budgets["kv"])
    NG = BH // G
    tq = _choose_q_tile(S_q, S_k, G, Dk, Dv, itemsize, budgets["step"])

    # Pad S_q up to a multiple of tq instead of requiring divisibility; padded
    # rows are sliced off after the call (zero Q rows -> uniform softmax, no NaN).
    S_q_pad = _round_up(S_q, tq)
    if S_q_pad != S_q:
        q = jnp.pad(q, ((0, 0), (0, S_q_pad - S_q), (0, 0)))
    n_q_tiles = S_q_pad // tq

    out_shapes = (
        # ctx as a lane-dense slab: heads of a group packed along the last dim.
        jax.ShapeDtypeStruct((NG, S_q_pad, G * Dv), Q.dtype),
        jax.ShapeDtypeStruct((BH, S_q_pad, S_k), Q.dtype),
    )

    ctx_slab, attn = pl.pallas_call(
        _attention_kernel,
        out_shape=out_shapes,
        grid_spec=pltpu.PrefetchScalarGridSpec(
            num_scalar_prefetch=0,
            grid=(NG, n_q_tiles),     # K^T/V blocks stay resident across inner q-tiles
            in_specs=[
                pl.BlockSpec((G, tq, Dk), lambda g, i: (g, i, 0)),
                pl.BlockSpec((G, Dk, S_k), lambda g, i: (g, 0, 0)),
                pl.BlockSpec((G, S_k, Dv), lambda g, i: (g, 0, 0)),
            ],
            out_specs=[
                pl.BlockSpec((1, tq, G * Dv), lambda g, i: (g, i, 0)),
                pl.BlockSpec((G, tq, S_k), lambda g, i: (g, i, 0)),
            ],
        ),
        compiler_params=pltpu.CompilerParams(
            dimension_semantics=("parallel", "parallel"),
            vmem_limit_bytes=budgets["vmem_limit"],
        ),
    )(q, kt, v)

    # Un-pack the lane-dense ctx slab back to [B, H, S_q, Dv]; drop padded rows.
    ctx = (
        ctx_slab[:, :S_q]
        .reshape(NG, S_q, G, Dv)
        .transpose(0, 2, 1, 3)
        .reshape(B, H, S_q, Dv)
    )
    return ctx, attn[:, :S_q].reshape(B, H, S_q, S_k)


def _reference(Q, K, V):
    scores = jnp.einsum(
        "bhqd,bhkd->bhqk", Q, K, precision=lax.Precision.HIGHEST
    ) / jnp.sqrt(jnp.float32(d_k))
    attn = jax.nn.softmax(scores, axis=-1)
    ctx = jnp.einsum(
        "bhqk,bhkd->bhqd", attn, V, precision=lax.Precision.HIGHEST
    )
    return ctx, attn


if __name__ == "__main__":
    key = jax.random.PRNGKey(0)
    kq, kk, kv = jax.random.split(key, 3)

    B, H, S = 2, 4, 8  # small shapes; d_k = d_v = 32 from the module
    Q = jax.random.normal(kq, (B, H, S, d_k), dtype=jnp.float32)
    K = jax.random.normal(kk, (B, H, S, d_k), dtype=jnp.float32)
    V = jax.random.normal(kv, (B, H, S, d_v), dtype=jnp.float32)

    ctx, attn = scaled_dot_product_attention(Q, K, V)
    jax.block_until_ready((ctx, attn))

    ctx_ref, attn_ref = _reference(Q, K, V)
    assert jnp.allclose(ctx, ctx_ref, atol=1e-4, rtol=1e-4), "context mismatch"
    assert jnp.allclose(attn, attn_ref, atol=2e-5, rtol=1e-5), "attn mismatch"

    print("KERNEL_OK")
</pallas_src>

<mosaic_0001>
module attributes {stable_mosaic.version = 11 : i64} {
  func.func @_attention_kernel(%arg0: i32, %arg1: i32, %arg2: memref<4x8x32xf32, #tpu.memory_space<vmem>>, %arg3: memref<4x32x8xf32, #tpu.memory_space<vmem>>, %arg4: memref<4x8x32xf32, #tpu.memory_space<vmem>>, %arg5: memref<1x8x128xf32, #tpu.memory_space<vmem>>, %arg6: memref<4x8x8xf32, #tpu.memory_space<vmem>>) attributes {dimension_semantics = [#tpu.dimension_semantics<parallel>, #tpu.dimension_semantics<parallel>], iteration_bounds = array<i64: 2, 1>, scalar_prefetch = 0 : i64, scratch_operands = 0 : i64, tpu.core_type = #tpu.core_type<tc>, window_params = [{transform_indices = @transform_0, window_bounds = array<i64: 4, 8, 32>}, {transform_indices = @transform_1, window_bounds = array<i64: 4, 32, 8>}, {transform_indices = @transform_2, window_bounds = array<i64: 4, 8, 32>}, {transform_indices = @transform_3, window_bounds = array<i64: 1, 8, 128>}, {transform_indices = @transform_4, window_bounds = array<i64: 4, 8, 8>}]} {
    %c0 = arith.constant 0 : index
    %c0_0 = arith.constant 0 : index
    %c0_1 = arith.constant 0 : index
    %0 = vector.load %arg2[%c0, %c0_0, %c0_1] : memref<4x8x32xf32, #tpu.memory_space<vmem>>, vector<4x8x32xf32>
    %c0_2 = arith.constant 0 : index
    %c0_3 = arith.constant 0 : index
    %c0_4 = arith.constant 0 : index
    %1 = vector.load %arg3[%c0_2, %c0_3, %c0_4] : memref<4x32x8xf32, #tpu.memory_space<vmem>>, vector<4x32x8xf32>
    %c0_5 = arith.constant 0 : index
    %c0_6 = arith.constant 0 : index
    %c0_7 = arith.constant 0 : index
    %2 = vector.load %arg4[%c0_5, %c0_6, %c0_7] : memref<4x8x32xf32, #tpu.memory_space<vmem>>, vector<4x8x32xf32>
    %cst = arith.constant dense<0.000000e+00> : vector<4x8x8xf32>
    %3 = tpu.matmul %0, %1, %cst {dimension_numbers = #tpu.dot_dimension_numbers<[2], [1], [1], [2], [0, 0, 0, 1, 1, 2], [0], [0]>} : vector<4x8x32xf32>, vector<4x32x8xf32>, vector<4x8x8xf32> -> vector<4x8x8xf32>
    %cst_8 = arith.constant 0.176776692 : f32
    %4 = vector.broadcast %cst_8 : f32 to vector<4x8x8xf32>
    %5 = arith.mulf %3, %4 : vector<4x8x8xf32>
    %cst_9 = arith.constant dense<0xFF800000> : vector<4x8xf32>
    %6 = vector.multi_reduction <maximumf>, %5, %cst_9 [2] : vector<4x8x8xf32> to vector<4x8xf32>
    %7 = vector.shape_cast %6 : vector<4x8xf32> to vector<4x8x1xf32>
    %8 = vector.broadcast %7 : vector<4x8x1xf32> to vector<4x8x8xf32>
    %9 = arith.subf %5, %8 : vector<4x8x8xf32>
    %10 = math.exp %9 : vector<4x8x8xf32>
    %cst_10 = arith.constant dense<0.000000e+00> : vector<4x8xf32>
    %11 = vector.multi_reduction <add>, %10, %cst_10 [2] : vector<4x8x8xf32> to vector<4x8xf32>
    %12 = vector.shape_cast %11 : vector<4x8xf32> to vector<4x8x1xf32>
    %13 = tpu.reciprocal %12 : vector<4x8x1xf32> -> vector<4x8x1xf32>
    %14 = vector.broadcast %13 : vector<4x8x1xf32> to vector<4x8x8xf32>
    %15 = arith.mulf %10, %14 : vector<4x8x8xf32>
    %c0_11 = arith.constant 0 : index
    %c0_12 = arith.constant 0 : index
    %c0_13 = arith.constant 0 : index
    %16 = vector.load %arg6[%c0_11, %c0_12, %c0_13] : memref<4x8x8xf32, #tpu.memory_space<vmem>>, vector<4x8x8xf32>
    tpu.vector_store %arg6[%c0_11, %c0_12, %c0_13], %15 {strides = array<i32>} : memref<4x8x8xf32, #tpu.memory_space<vmem>>, vector<4x8x8xf32>,
    %cst_14 = arith.constant dense<0.000000e+00> : vector<4x8x32xf32>
    %17 = tpu.matmul %15, %2, %cst_14 {dimension_numbers = #tpu.dot_dimension_numbers<[2], [1], [1], [2], [0, 0, 0, 1, 1, 2], [0], [0]>} : vector<4x8x8xf32>, vector<4x8x32xf32>, vector<4x8x32xf32> -> vector<4x8x32xf32>
    %18 = tpu.transpose %17, [1, 0, 2] : vector<4x8x32xf32> -> vector<8x4x32xf32>
    %19 = vector.shape_cast %18 : vector<8x4x32xf32> to vector<8x128xf32>
    %c0_15 = arith.constant 0 : index
    %c0_16 = arith.constant 0 : index
    %c0_17 = arith.constant 0 : index
    %20 = vector.load %arg5[%c0_15, %c0_16, %c0_17] : memref<1x8x128xf32, #tpu.memory_space<vmem>>, vector<1x8x128xf32>
    %21 = vector.shape_cast %20 : vector<1x8x128xf32> to vector<8x128xf32>
    %22 = vector.shape_cast %19 : vector<8x128xf32> to vector<1x8x128xf32>
    tpu.vector_store %arg5[%c0_15, %c0_16, %c0_17], %22 {strides = array<i32>} : memref<1x8x128xf32, #tpu.memory_space<vmem>>, vector<1x8x128xf32>,
    return
  }
  func.func @transform_0(%arg0: i32, %arg1: i32) -> (i32, i32, i32) {
    %c0_i32 = arith.constant 0 : i32
    %c0_i32_0 = arith.constant 0 : i32
    return %arg0, %arg1, %c0_i32 : i32, i32, i32
  }
  func.func @transform_1(%arg0: i32, %arg1: i32) -> (i32, i32, i32) {
    %c0_i32 = arith.constant 0 : i32
    %c0_i32_0 = arith.constant 0 : i32
    %c0_i32_1 = arith.constant 0 : i32
    return %arg0, %c0_i32, %c0_i32_0 : i32, i32, i32
  }
  func.func @transform_2(%arg0: i32, %arg1: i32) -> (i32, i32, i32) {
    %c0_i32 = arith.constant 0 : i32
    %c0_i32_0 = arith.constant 0 : i32
    %c0_i32_1 = arith.constant 0 : i32
    return %arg0, %c0_i32, %c0_i32_0 : i32, i32, i32
  }
  func.func @transform_3(%arg0: i32, %arg1: i32) -> (i32, i32, i32) {
    %c0_i32 = arith.constant 0 : i32
    %c0_i32_0 = arith.constant 0 : i32
    return %arg0, %arg1, %c0_i32 : i32, i32, i32
  }
  func.func @transform_4(%arg0: i32, %arg1: i32) -> (i32, i32, i32) {
    %c0_i32 = arith.constant 0 : i32
    %c0_i32_0 = arith.constant 0 : i32
    return %arg0, %arg1, %c0_i32 : i32, i32, i32
  }
}

</mosaic_0001>

<llo_original>
// kernel: tpu_custom_call.1
$region0: #{tpu_custom_call.1}
  #allocation0 [shape = 'u32[]', space=smem, size = 0x4, offset = 0x4, fixed_abs, tag = 'smem constant byte address 0x4 - core index']
  #allocation1 [shape = 'u32[144,128]{1,0:T(1,128)}', space=vmem, size = 0x12000, scoped, tag = 'internal scratch']
  %s0 = inlined_call_operand.vmem [shape: f32[8,8,32], index: 0, kind: input, shape index: {}]
  %s1 = inlined_call_operand.vmem [shape: f32[8,32,8], index: 1, kind: input, shape index: {}]
  %s2 = inlined_call_operand.vmem [shape: f32[8,8,32], index: 2, kind: input, shape index: {}]
  %s3 = inlined_call_operand.hbm [shape: f32[2,8,128], index: 3, kind: output, shape index: {0}]
  %s4 = inlined_call_operand.hbm [shape: f32[8,8,8], index: 4, kind: output, shape index: {1}]
  %5 = xla_tuple %s3, %s4
  %s6 = sld [smem:[#allocation0]]
  $region53: #{tpu_custom_call.1} parent=0
    _
  %s8 = ssub.s32 1, %s6
  %s9 = scalar_select 0, %s8, %s6
  $region1: #{tpu_custom_call.1} parent=0
    #allocation2 [shape = 'u8[8192]{0}', space=vmem, size = 0x2000, scoped, tag = 'output window, operand 0']
    #allocation3 [shape = 's32[2]{0}', space=sflag, size = 0x8, scoped, tag = 'scoped memory for tpu_custom_call.1']
    #allocation4 [shape = 'u8[32768]{0}', space=vmem, size = 0x8000, scoped, tag = 'output window, operand 1']
    #allocation5 [shape = 's32[2]{0}', space=sflag, size = 0x8, scoped, tag = 'scoped memory for tpu_custom_call.1']
    %10 = vsyncpa [#allocation3], 0
    %s11 = scalar_lea.sflag [#allocation3], 1
    %12 = vsyncpa %s11, 0
    %13 = vsyncpa [#allocation5], 0
    %s14 = scalar_lea.sflag [#allocation5], 1
    %15 = vsyncpa %s14, 0
    loop: start=0, step=1, limit=4
    $region2: #{tpu_custom_call.1} parent=1 // loop_pre_header
      _
    $region3: #{tpu_custom_call.1} parent=1 // loop_header
      %s17 = sphi 0, %s21
      %p18 = scmp.ge.s32.totalorder %s17, 4
      %s24 = sphi 0, %s36
      %s25 = sphi 0, %s32
      %s26 = sphi 0, %s24
      %s27 = sphi 0, %s25
      %s28 = sphi 0, %s26
      %s29 = sphi 0, %s27
      %s41 = sphi 0, %s43
      %s44 = sphi 0, %s41
      %s45 = sphi 0, %s44
      %s61 = sphi 0, %s45
      %s67 = sphi 0, %s69
      %s70 = sphi 0, %s67
      %s71 = sphi 0, %s70
      %s87 = sphi 0, %s71
      %s93 = sphi 0, %s95
      %s96 = sphi 0, %s93
      %s97 = sphi 0, %s96
      %s113 = sphi 0, %s97
      %s121 = sphi 0, %s123
      %s124 = sphi 0, %s121
      %s125 = sphi 0, %s124
      %s141 = sphi 0, %s125
      %s149 = sphi 0, %s151
      %s152 = sphi 0, %s149
      %s153 = sphi 0, %s152
      %s169 = sphi 0, %s153
    $region4: #{tpu_custom_call.1} parent=1 // loop_header_branch
      %20 = sbr.rel (%p18) target = $region8
    $region5: #{tpu_custom_call.1} parent=1 // loop_body
      %s22 = ssub.s32 %s17, 1
      %s23 = ssub.s32 %s17, 2
      %s30 = sadd.s32 1, %s25
      %p31 = scmp.ge.s32.totalorder %s30, 1
      %s32 = scalar_select %p31, 0, %s30
      %s33 = sadd.s32 1, %s24
      %s34 = scalar_select %p31, %s33, %s24
      %p35 = scmp.ge.s32.totalorder %s34, 2
      %s36 = scalar_select %p35, 0, %s34
      %s37 = ssub.s32 %s24, %s36
      %s38 = ssub.s32 %s25, %s32
      %s39 = sor.u32 %s37, %s38
      %p40 = scmp.eq.s32.totalorder %s39, 0
      %s42 = sadd.s32 %s41, 1
      %s43 = scalar_select %p40, %s41, %s42
      %p46 = pneg %p40
      %p47 = scmp.eq.s32.totalorder %s17, 1
      %p48 = por %p46, %p47
      %p49 = scmp.ne.s32.totalorder %s41, %s44
      %p50 = scmp.eq.s32.totalorder %s17, 0
      %p51 = por %p49, %p50
      %p52 = scmp.ne.s32.totalorder %s41, %s44
      %p53 = scmp.eq.s32.totalorder %s22, 1
      %p54 = por %p52, %p53
      %p55 = scmp.ne.s32.totalorder %s44, %s45
      %p56 = scmp.eq.s32.totalorder %s22, 0
      %p57 = por %p55, %p56
      %p58 = scmp.ne.s32.totalorder %s44, %s45
      %p59 = scmp.eq.s32.totalorder %s23, 1
      %p60 = por %p58, %p59
      %p62 = scmp.ne.s32.totalorder %s45, %s61
      %p63 = scmp.eq.s32.totalorder %s23, 0
      %p64 = por %p62, %p63
      %s65 = ssub.s32 %s24, %s36
      %p66 = scmp.eq.s32.totalorder %s65, 0
      %s68 = sadd.s32 %s67, 1
      %s69 = scalar_select %p66, %s67, %s68
      %p72 = pneg %p66
      %p73 = scmp.eq.s32.totalorder %s17, 1
      %p74 = por %p72, %p73
      %p75 = scmp.ne.s32.totalorder %s67, %s70
      %p76 = scmp.eq.s32.totalorder %s17, 0
      %p77 = por %p75, %p76
      %p78 = scmp.ne.s32.totalorder %s67, %s70
      %p79 = scmp.eq.s32.totalorder %s22, 1
      %p80 = por %p78, %p79
      %p81 = scmp.ne.s32.totalorder %s70, %s71
      %p82 = scmp.eq.s32.totalorder %s22, 0
      %p83 = por %p81, %p82
      %p84 = scmp.ne.s32.totalorder %s70, %s71
      %p85 = scmp.eq.s32.totalorder %s23, 1
      %p86 = por %p84, %p85
      %p88 = scmp.ne.s32.totalorder %s71, %s87
      %p89 = scmp.eq.s32.totalorder %s23, 0
      %p90 = por %p88, %p89
      %s91 = ssub.s32 %s24, %s36
      %p92 = scmp.eq.s32.totalorder %s91, 0
      %s94 = sadd.s32 %s93, 1
      %s95 = scalar_select %p92, %s93, %s94
      %p98 = pneg %p92
      %p99 = scmp.eq.s32.totalorder %s17, 1
      %p100 = por %p98, %p99
      %p101 = scmp.ne.s32.totalorder %s93, %s96
      %p102 = scmp.eq.s32.totalorder %s17, 0
      %p103 = por %p101, %p102
      %p104 = scmp.ne.s32.totalorder %s93, %s96
      %p105 = scmp.eq.s32.totalorder %s22, 1
      %p106 = por %p104, %p105
      %p107 = scmp.ne.s32.totalorder %s96, %s97
      %p108 = scmp.eq.s32.totalorder %s22, 0
      %p109 = por %p107, %p108
      %p110 = scmp.ne.s32.totalorder %s96, %s97
      %p111 = scmp.eq.s32.totalorder %s23, 1
      %p112 = por %p110, %p111
      %p114 = scmp.ne.s32.totalorder %s97, %s113
      %p115 = scmp.eq.s32.totalorder %s23, 0
      %p116 = por %p114, %p115
      %s117 = ssub.s32 %s24, %s36
      %s118 = ssub.s32 %s25, %s32
      %s119 = sor.u32 %s117, %s118
      %p120 = scmp.eq.s32.totalorder %s119, 0
      %s122 = sadd.s32 %s121, 1
      %s123 = scalar_select %p120, %s121, %s122
      %p126 = pneg %p120
      %p127 = scmp.eq.s32.totalorder %s17, 1
      %p128 = por %p126, %p127
      %p129 = scmp.ne.s32.totalorder %s121, %s124
      %p130 = scmp.eq.s32.totalorder %s17, 0
      %p131 = por %p129, %p130
      %p132 = scmp.ne.s32.totalorder %s121, %s124
      %p133 = scmp.eq.s32.totalorder %s22, 1
      %p134 = por %p132, %p133
      %p135 = scmp.ne.s32.totalorder %s124, %s125
      %p136 = scmp.eq.s32.totalorder %s22, 0
      %p137 = por %p135, %p136
      %p138 = scmp.ne.s32.totalorder %s124, %s125
      %p139 = scmp.eq.s32.totalorder %s23, 1
      %p140 = por %p138, %p139
      %p142 = scmp.ne.s32.totalorder %s125, %s141
      %p143 = scmp.eq.s32.totalorder %s23, 0
      %p144 = por %p142, %p143
      %s145 = ssub.s32 %s24, %s36
      %s146 = ssub.s32 %s25, %s32
      %s147 = sor.u32 %s145, %s146
      %p148 = scmp.eq.s32.totalorder %s147, 0
      %s150 = sadd.s32 %s149, 1
      %s151 = scalar_select %p148, %s149, %s150
      %p154 = pneg %p148
      %p155 = scmp.eq.s32.totalorder %s17, 1
      %p156 = por %p154, %p155
      %p157 = scmp.ne.s32.totalorder %s149, %s152
      %p158 = scmp.eq.s32.totalorder %s17, 0
      %p159 = por %p157, %p158
      %p160 = scmp.ne.s32.totalorder %s149, %s152
      %p161 = scmp.eq.s32.totalorder %s22, 1
      %p162 = por %p160, %p161
      %p163 = scmp.ne.s32.totalorder %s152, %s153
      %p164 = scmp.eq.s32.totalorder %s22, 0
      %p165 = por %p163, %p164
      %p166 = scmp.ne.s32.totalorder %s152, %s153
      %p167 = scmp.eq.s32.totalorder %s23, 1
      %p168 = por %p166, %p167
      %p170 = scmp.ne.s32.totalorder %s153, %s169
      %p171 = scmp.eq.s32.totalorder %s23, 0
      %p172 = por %p170, %p171
      %p173 = scmp.le.s32.totalorder 1, %s17
      %p174 = scmp.lt.s32.totalorder %s17, 3
      %p175 = pnand %p173, %p174
      %p176 = pneg %p175
      // Predicated region
      $region9: #{tpu_custom_call.1} parent=5 // pred_check
        _
      $region10: #{tpu_custom_call.1} parent=5 // pred_check_branch
        %178 = sbr.rel (%p175) target = $region12
      $region11: #{tpu_custom_call.1} parent=5 // pred_region
        %s179 = ssub.s32 %s17, 1
      $region12: #{tpu_custom_call.1} parent=5 // pred_fallthru
        _
      %p180 = scmp.lt.s32.totalorder %s17, 2
      // Predicated region
      $region13: #{tpu_custom_call.1} parent=5 // pred_check
        %p181 = pneg %p180
      $region14: #{tpu_custom_call.1} parent=5 // pred_check_branch
        %183 = sbr.rel (%p181) target = $region16
      $region15: #{tpu_custom_call.1} parent=5 // pred_region
        // Predicated region
        $region17: #{tpu_custom_call.1} parent=15 // pred_check
          %p184 = pneg %p51
        $region18: #{tpu_custom_call.1} parent=15 // pred_check_branch
          %186 = sbr.rel (%p184) target = $region20
        $region19: #{tpu_custom_call.1} parent=15 // pred_region
          %s187 = smul.u32 4, %s24
          %p188 = scmp.lt.s32.totalorder %s187, 7
          %s189 = scalar_select %p188, %s187, 7
          %p190 = scmp.lt.s32.totalorder %s25, 0
          %s191 = scalar_select %p190, %s25, 0
          %s192 = sadd.s32 %s191, %s189
          %s193 = smul.addr %s192, 8
          %s194 = scalar_lea.vmem %s0, %s193
          %s195 = smul.u32 4, %s24
        $region20: #{tpu_custom_call.1} parent=15 // pred_fallthru
          _
        // Predicated region
        $region21: #{tpu_custom_call.1} parent=15 // pred_check
          %p196 = pneg %p77
        $region22: #{tpu_custom_call.1} parent=15 // pred_check_branch
          %198 = sbr.rel (%p196) target = $region24
        $region23: #{tpu_custom_call.1} parent=15 // pred_region
          %s199 = smul.u32 4, %s24
          %p200 = scmp.lt.s32.totalorder %s199, 7
          %s201 = scalar_select %p200, %s199, 7
          %s202 = smul.addr %s201, 4
          %s203 = smul.addr %s202, 8
          %s204 = scalar_lea.vmem %s1, %s203
          %s205 = smul.u32 4, %s24
        $region24: #{tpu_custom_call.1} parent=15 // pred_fallthru
          _
        // Predicated region
        $region25: #{tpu_custom_call.1} parent=15 // pred_check
          %p206 = pneg %p103
        $region26: #{tpu_custom_call.1} parent=15 // pred_check_branch
          %208 = sbr.rel (%p206) target = $region28
        $region27: #{tpu_custom_call.1} parent=15 // pred_region
          %s209 = smul.u32 4, %s24
          %p210 = scmp.lt.s32.totalorder %s209, 7
          %s211 = scalar_select %p210, %s209, 7
          %s212 = smul.addr %s211, 8
          %s213 = scalar_lea.vmem %s2, %s212
          %s214 = smul.u32 4, %s24
        $region28: #{tpu_custom_call.1} parent=15 // pred_fallthru
          _
      $region16: #{tpu_custom_call.1} parent=5 // pred_fallthru
        _
      %p215 = scmp.le.s32.totalorder 1, %s17
      %p216 = scmp.lt.s32.totalorder %s17, 3
      %p217 = pnand %p215, %p216
      %p218 = pneg %p217
      // Predicated region
      $region29: #{tpu_custom_call.1} parent=5 // pred_check
        _
      $region30: #{tpu_custom_call.1} parent=5 // pred_check_branch
        %220 = sbr.rel (%p217) target = $region32
      $region31: #{tpu_custom_call.1} parent=5 // pred_region
        %s221 = ssub.s32 %s17, 1
        %s222 = smul.u32 4, %s26
        %p223 = scmp.lt.s32.totalorder %s222, 7
        %s224 = scalar_select %p223, %s222, 7
        %p225 = scmp.lt.s32.totalorder %s27, 0
        %s226 = scalar_select %p225, %s27, 0
        %s227 = sadd.s32 %s226, %s224
        %s228 = smul.addr %s227, 8
        %s229 = scalar_lea.vmem %s0, %s228
        %p230 = pneg %p57
        %p231 = pneg %p54
        %s232 = smul.u32 4, %s26
        %p233 = scmp.lt.s32.totalorder %s232, 7
        %s234 = scalar_select %p233, %s232, 7
        %s235 = smul.addr %s234, 4
        %s236 = smul.addr %s235, 8
        %s237 = scalar_lea.vmem %s1, %s236
        %p238 = pneg %p83
        %p239 = pneg %p80
        %s240 = smul.u32 4, %s26
        %p241 = scmp.lt.s32.totalorder %s240, 7
        %s242 = scalar_select %p241, %s240, 7
        %s243 = smul.addr %s242, 8
        %s244 = scalar_lea.vmem %s2, %s243
        %p245 = pneg %p109
        %p246 = pneg %p106
        %p247 = pneg %p137
        %p248 = pneg %p134
        %s249 = sand.u32 %s124, 1
        %s250 = scalar_lea.sflag [#allocation3], %s249
        %s251 = sand.u32 %s124, 1
        %s252 = smul.addr %s251, 8
        %s253 = scalar_lea.vmem [#allocation2], %s252
        %p254 = pneg %p165
        %p255 = pneg %p162
        %s256 = sand.u32 %s152, 1
        %s257 = scalar_lea.sflag [#allocation5], %s256
        %s258 = sand.u32 %s152, 1
        %s259 = smul.addr %s258, 32
        %s260 = scalar_lea.vmem [#allocation4], %s259
        %s261 = smul.u32 4, %s26
        %p262 = scmp.lt.s32.totalorder %s261, 7
        %s263 = scalar_select %p262, %s261, 7
        %p264 = scmp.lt.s32.totalorder %s27, 0
        %s265 = scalar_select %p264, %s27, 0
        %s266 = sadd.s32 %s265, %s263
        %s267 = smul.addr %s266, 8
        %s268 = scalar_lea.vmem %s0, %s267
        %s269 = smul.u32 4, %s26
        %s270 = smul.u32 4, %s26
        %p271 = scmp.lt.s32.totalorder %s270, 7
        %s272 = scalar_select %p271, %s270, 7
        %s273 = smul.addr %s272, 4
        %s274 = smul.addr %s273, 8
        %s275 = scalar_lea.vmem %s1, %s274
        %s276 = smul.u32 4, %s26
        %s277 = smul.u32 4, %s26
        %p278 = scmp.lt.s32.totalorder %s277, 7
        %s279 = scalar_select %p278, %s277, 7
        %s280 = smul.addr %s279, 8
        %s281 = scalar_lea.vmem %s2, %s280
        %s282 = smul.u32 4, %s26
        %s283 = smul.u32 4, %s26
        %v284 = vld [vmem:[%s268] sm:$0xff]
        %v285 = vld [vmem:[%s268 + $0x8] sm:$0xff]
        %v286 = vld [vmem:[%s268 + $0x10] sm:$0xff]
        %v287 = vld [vmem:[%s268 + $0x18] sm:$0xff]
        %v288 = vld [vmem:[%s275] sm:$0xff]
        %v289 = vld [vmem:[%s275 + $0x8] sm:$0xff]
        %v290 = vld [vmem:[%s275 + $0x10] sm:$0xff]
        %v291 = vld [vmem:[%s275 + $0x18] sm:$0xff]
        %v292 = vld [vmem:[%s275 + $0x20] sm:$0xff]
        %v293 = vld [vmem:[%s275 + $0x28] sm:$0xff]
        %v294 = vld [vmem:[%s275 + $0x30] sm:$0xff]
        %v295 = vld [vmem:[%s275 + $0x38] sm:$0xff]
        %v296 = vld [vmem:[%s275 + $0x40] sm:$0xff]
        %v297 = vld [vmem:[%s275 + $0x48] sm:$0xff]
        %v298 = vld [vmem:[%s275 + $0x50] sm:$0xff]
        %v299 = vld [vmem:[%s275 + $0x58] sm:$0xff]
        %v300 = vld [vmem:[%s275 + $0x60] sm:$0xff]
        %v301 = vld [vmem:[%s275 + $0x68] sm:$0xff]
        %v302 = vld [vmem:[%s275 + $0x70] sm:$0xff]
        %v303 = vld [vmem:[%s275 + $0x78] sm:$0xff]
        %v304 = vld [vmem:[%s281] sm:$0xff]
        %v305 = vld [vmem:[%s281 + $0x8] sm:$0xff]
        %v306 = vld [vmem:[%s281 + $0x10] sm:$0xff]
        %v307 = vld [vmem:[%s281 + $0x18] sm:$0xff]
        %vm308 = vcmask 261120
        %v310 = vsel %vm308, %v284, 0
        %312 = vmatprep.subr.mxu0 0.0
        %313 = vmatpush1.msra.mxu0 %v288
        %314 = vmatprep.subr.mxu0 0.0
        %315 = vmatpush1.msra.mxu0 %v289
        %316 = vmatprep.subr.mxu0 0.0
        %317 = vmatpush1.msra.mxu0 %v290
        %318 = vmatprep.subr.mxu0 0.0
        %319 = vmatpush1.msra.mxu0 %v291
        %320 = vmatprep.subr.mxu0 0.0
        %321 = vmatpush1.msra.mxu0 0.0
        %322 = vmatprep.subr.mxu0 0.0
        %323 = vmatpush1.msra.mxu0 0.0
        %324 = vmatprep.subr.mxu0 0.0
        %325 = vmatpush1.msra.mxu0 0.0
        %326 = vmatprep.subr.mxu0 0.0
        %327 = vmatpush1.msra.mxu0 0.0
        %328 = vmatprep.subr.mxu0 0.0
        %329 = vmatpush1.msra.mxu0 0.0
        %330 = vmatprep.subr.mxu0 0.0
        %331 = vmatpush1.msra.mxu0 0.0
        %332 = vmatprep.subr.mxu0 0.0
        %333 = vmatpush1.msra.mxu0 0.0
        %334 = vmatprep.subr.mxu0 0.0
        %335 = vmatpush1.msra.mxu0 0.0
        %336 = vmatprep.subr.mxu0 0.0
        %337 = vmatpush1.msra.mxu0 0.0
        %338 = vmatprep.subr.mxu0 0.0
        %339 = vmatpush1.msra.mxu0 0.0
        %340 = vmatprep.subr.mxu0 0.0
        %341 = vmatpush1.msra.mxu0 0.0
        %342 = vmatprep.subr.mxu0 0.0
        %343 = vmatpush1.msra.mxu0 0.0
        %344 = vmatprep.subr.mxu0 0.0
        %345 = vmatpush1.msra.mxu0 0.0
        %346 = vmatprep.subr.mxu0 0.0
        %347 = vmatpush1.msra.mxu0 0.0
        %348 = vmatprep.subr.mxu0 0.0
        %349 = vmatpush1.msra.mxu0 0.0
        %350 = vmatprep.subr.mxu0 0.0
        %351 = vmatpush1.msra.mxu0 0.0
        %352 = vmatprep.subr.mxu0 0.0
        %353 = vmatpush1.msra.mxu0 0.0
        %354 = vmatprep.subr.mxu0 0.0
        %355 = vmatpush1.msra.mxu0 0.0
        %356 = vmatprep.subr.mxu0 0.0
        %357 = vmatpush1.msra.mxu0 0.0
        %358 = vmatprep.subr.mxu0 0.0
        %359 = vmatpush1.msra.mxu0 0.0
        %360 = vmatprep.subr.mxu0 0.0
        %361 = vmatpush1.msra.mxu0 0.0
        %362 = vmatprep.subr.mxu0 0.0
        %363 = vmatpush1.msra.mxu0 0.0
        %364 = vmatprep.subr.mxu0 0.0
        %365 = vmatpush1.msra.mxu0 0.0
        %366 = vmatprep.subr.mxu0 0.0
        %367 = vmatpush1.msra.mxu0 0.0
        %368 = vmatprep.subr.mxu0 0.0
        %369 = vmatpush1.msra.mxu0 0.0
        %370 = vmatprep.subr.mxu0 0.0
        %371 = vmatpush1.msra.mxu0 0.0
        %372 = vmatprep.subr.mxu0 0.0
        %373 = vmatpush1.msra.mxu0 0.0
        %374 = vmatprep.subr.mxu0 0.0
        %375 = vmatpush1.msra.mxu0 0.0
        %376 = vmatprep.mubr.f32.mxu0 0.0
        %377 = vmatmul.mubr.f32.gmra.mrb[0].mxu0 %v310
        %v378 = vpop.f32.mrb[0].mxu0
        %v379 = vadd.f32 0.0, %v378
        %v380 = vpop.f32.mrb[0].mxu0
        %381 = vdwg.mxu0
        %v383 = vsel %vm308, %v285, 0
        %385 = vmatprep.subr.mxu0 0.0
        %386 = vmatpush1.msra.mxu0 %v292
        %387 = vmatprep.subr.mxu0 0.0
        %388 = vmatpush1.msra.mxu0 %v293
        %389 = vmatprep.subr.mxu0 0.0
        %390 = vmatpush1.msra.mxu0 %v294
        %391 = vmatprep.subr.mxu0 0.0
        %392 = vmatpush1.msra.mxu0 %v295
        %393 = vmatprep.subr.mxu0 0.0
        %394 = vmatpush1.msra.mxu0 0.0
        %395 = vmatprep.subr.mxu0 0.0
        %396 = vmatpush1.msra.mxu0 0.0
        %397 = vmatprep.subr.mxu0 0.0
        %398 = vmatpush1.msra.mxu0 0.0
        %399 = vmatprep.subr.mxu0 0.0
        %400 = vmatpush1.msra.mxu0 0.0
        %401 = vmatprep.subr.mxu0 0.0
        %402 = vmatpush1.msra.mxu0 0.0
        %403 = vmatprep.subr.mxu0 0.0
        %404 = vmatpush1.msra.mxu0 0.0
        %405 = vmatprep.subr.mxu0 0.0
        %406 = vmatpush1.msra.mxu0 0.0
        %407 = vmatprep.subr.mxu0 0.0
        %408 = vmatpush1.msra.mxu0 0.0
        %409 = vmatprep.subr.mxu0 0.0
        %410 = vmatpush1.msra.mxu0 0.0
        %411 = vmatprep.subr.mxu0 0.0
        %412 = vmatpush1.msra.mxu0 0.0
        %413 = vmatprep.subr.mxu0 0.0
        %414 = vmatpush1.msra.mxu0 0.0
        %415 = vmatprep.subr.mxu0 0.0
        %416 = vmatpush1.msra.mxu0 0.0
        %417 = vmatprep.subr.mxu0 0.0
        %418 = vmatpush1.msra.mxu0 0.0
        %419 = vmatprep.subr.mxu0 0.0
        %420 = vmatpush1.msra.mxu0 0.0
        %421 = vmatprep.subr.mxu0 0.0
        %422 = vmatpush1.msra.mxu0 0.0
        %423 = vmatprep.subr.mxu0 0.0
        %424 = vmatpush1.msra.mxu0 0.0
        %425 = vmatprep.subr.mxu0 0.0
        %426 = vmatpush1.msra.mxu0 0.0
        %427 = vmatprep.subr.mxu0 0.0
        %428 = vmatpush1.msra.mxu0 0.0
        %429 = vmatprep.subr.mxu0 0.0
        %430 = vmatpush1.msra.mxu0 0.0
        %431 = vmatprep.subr.mxu0 0.0
        %432 = vmatpush1.msra.mxu0 0.0
        %433 = vmatprep.subr.mxu0 0.0
        %434 = vmatpush1.msra.mxu0 0.0
        %435 = vmatprep.subr.mxu0 0.0
        %436 = vmatpush1.msra.mxu0 0.0
        %437 = vmatprep.subr.mxu0 0.0
        %438 = vmatpush1.msra.mxu0 0.0
        %439 = vmatprep.subr.mxu0 0.0
        %440 = vmatpush1.msra.mxu0 0.0
        %441 = vmatprep.subr.mxu0 0.0
        %442 = vmatpush1.msra.mxu0 0.0
        %443 = vmatprep.subr.mxu0 0.0
        %444 = vmatpush1.msra.mxu0 0.0
        %445 = vmatprep.subr.mxu0 0.0
        %446 = vmatpush1.msra.mxu0 0.0
        %447 = vmatprep.subr.mxu0 0.0
        %448 = vmatpush1.msra.mxu0 0.0
        %449 = vmatprep.mubr.f32.mxu0 0.0
        %450 = vmatmul.mubr.f32.gmra.mrb[0].mxu0 %v383
        %v451 = vpop.f32.mrb[0].mxu0
        %v452 = vadd.f32 0.0, %v451
        %v453 = vpop.f32.mrb[0].mxu0
        %454 = vdwg.mxu0
        %v456 = vsel %vm308, %v286, 0
        %458 = vmatprep.subr.mxu0 0.0
        %459 = vmatpush1.msra.mxu0 %v296
        %460 = vmatprep.subr.mxu0 0.0
        %461 = vmatpush1.msra.mxu0 %v297
        %462 = vmatprep.subr.mxu0 0.0
        %463 = vmatpush1.msra.mxu0 %v298
        %464 = vmatprep.subr.mxu0 0.0
        %465 = vmatpush1.msra.mxu0 %v299
        %466 = vmatprep.subr.mxu0 0.0
        %467 = vmatpush1.msra.mxu0 0.0
        %468 = vmatprep.subr.mxu0 0.0
        %469 = vmatpush1.msra.mxu0 0.0
        %470 = vmatprep.subr.mxu0 0.0
        %471 = vmatpush1.msra.mxu0 0.0
        %472 = vmatprep.subr.mxu0 0.0
        %473 = vmatpush1.msra.mxu0 0.0
        %474 = vmatprep.subr.mxu0 0.0
        %475 = vmatpush1.msra.mxu0 0.0
        %476 = vmatprep.subr.mxu0 0.0
        %477 = vmatpush1.msra.mxu0 0.0
        %478 = vmatprep.subr.mxu0 0.0
        %479 = vmatpush1.msra.mxu0 0.0
        %480 = vmatprep.subr.mxu0 0.0
        %481 = vmatpush1.msra.mxu0 0.0
        %482 = vmatprep.subr.mxu0 0.0
        %483 = vmatpush1.msra.mxu0 0.0
        %484 = vmatprep.subr.mxu0 0.0
        %485 = vmatpush1.msra.mxu0 0.0
        %486 = vmatprep.subr.mxu0 0.0
        %487 = vmatpush1.msra.mxu0 0.0
        %488 = vmatprep.subr.mxu0 0.0
        %489 = vmatpush1.msra.mxu0 0.0
        %490 = vmatprep.subr.mxu0 0.0
        %491 = vmatpush1.msra.mxu0 0.0
        %492 = vmatprep.subr.mxu0 0.0
        %493 = vmatpush1.msra.mxu0 0.0
        %494 = vmatprep.subr.mxu0 0.0
        %495 = vmatpush1.msra.mxu0 0.0
        %496 = vmatprep.subr.mxu0 0.0
        %497 = vmatpush1.msra.mxu0 0.0
        %498 = vmatprep.subr.mxu0 0.0
        %499 = vmatpush1.msra.mxu0 0.0
        %500 = vmatprep.subr.mxu0 0.0
        %501 = vmatpush1.msra.mxu0 0.0
        %502 = vmatprep.subr.mxu0 0.0
        %503 = vmatpush1.msra.mxu0 0.0
        %504 = vmatprep.subr.mxu0 0.0
        %505 = vmatpush1.msra.mxu0 0.0
        %506 = vmatprep.subr.mxu0 0.0
        %507 = vmatpush1.msra.mxu0 0.0
        %508 = vmatprep.subr.mxu0 0.0
        %509 = vmatpush1.msra.mxu0 0.0
        %510 = vmatprep.subr.mxu0 0.0
        %511 = vmatpush1.msra.mxu0 0.0
        %512 = vmatprep.subr.mxu0 0.0
        %513 = vmatpush1.msra.mxu0 0.0
        %514 = vmatprep.subr.mxu0 0.0
        %515 = vmatpush1.msra.mxu0 0.0
        %516 = vmatprep.subr.mxu0 0.0
        %517 = vmatpush1.msra.mxu0 0.0
        %518 = vmatprep.subr.mxu0 0.0
        %519 = vmatpush1.msra.mxu0 0.0
        %520 = vmatprep.subr.mxu0 0.0
        %521 = vmatpush1.msra.mxu0 0.0
        %522 = vmatprep.mubr.f32.mxu0 0.0
        %523 = vmatmul.mubr.f32.gmra.mrb[0].mxu0 %v456
        %v524 = vpop.f32.mrb[0].mxu0
        %v525 = vadd.f32 0.0, %v524
        %v526 = vpop.f32.mrb[0].mxu0
        %527 = vdwg.mxu0
        %v529 = vsel %vm308, %v287, 0
        %531 = vmatprep.subr.mxu0 0.0
        %532 = vmatpush1.msra.mxu0 %v300
        %533 = vmatprep.subr.mxu0 0.0
        %534 = vmatpush1.msra.mxu0 %v301
        %535 = vmatprep.subr.mxu0 0.0
        %536 = vmatpush1.msra.mxu0 %v302
        %537 = vmatprep.subr.mxu0 0.0
        %538 = vmatpush1.msra.mxu0 %v303
        %539 = vmatprep.subr.mxu0 0.0
        %540 = vmatpush1.msra.mxu0 0.0
        %541 = vmatprep.subr.mxu0 0.0
        %542 = vmatpush1.msra.mxu0 0.0
        %543 = vmatprep.subr.mxu0 0.0
        %544 = vmatpush1.msra.mxu0 0.0
        %545 = vmatprep.subr.mxu0 0.0
        %546 = vmatpush1.msra.mxu0 0.0
        %547 = vmatprep.subr.mxu0 0.0
        %548 = vmatpush1.msra.mxu0 0.0
        %549 = vmatprep.subr.mxu0 0.0
        %550 = vmatpush1.msra.mxu0 0.0
        %551 = vmatprep.subr.mxu0 0.0
        %552 = vmatpush1.msra.mxu0 0.0
        %553 = vmatprep.subr.mxu0 0.0
        %554 = vmatpush1.msra.mxu0 0.0
        %555 = vmatprep.subr.mxu0 0.0
        %556 = vmatpush1.msra.mxu0 0.0
        %557 = vmatprep.subr.mxu0 0.0
        %558 = vmatpush1.msra.mxu0 0.0
        %559 = vmatprep.subr.mxu0 0.0
        %560 = vmatpush1.msra.mxu0 0.0
        %561 = vmatprep.subr.mxu0 0.0
        %562 = vmatpush1.msra.mxu0 0.0
        %563 = vmatprep.subr.mxu0 0.0
        %564 = vmatpush1.msra.mxu0 0.0
        %565 = vmatprep.subr.mxu0 0.0
        %566 = vmatpush1.msra.mxu0 0.0
        %567 = vmatprep.subr.mxu0 0.0
        %568 = vmatpush1.msra.mxu0 0.0
        %569 = vmatprep.subr.mxu0 0.0
        %570 = vmatpush1.msra.mxu0 0.0
        %571 = vmatprep.subr.mxu0 0.0
        %572 = vmatpush1.msra.mxu0 0.0
        %573 = vmatprep.subr.mxu0 0.0
        %574 = vmatpush1.msra.mxu0 0.0
        %575 = vmatprep.subr.mxu0 0.0
        %576 = vmatpush1.msra.mxu0 0.0
        %577 = vmatprep.subr.mxu0 0.0
        %578 = vmatpush1.msra.mxu0 0.0
        %579 = vmatprep.subr.mxu0 0.0
        %580 = vmatpush1.msra.mxu0 0.0
        %581 = vmatprep.subr.mxu0 0.0
        %582 = vmatpush1.msra.mxu0 0.0
        %583 = vmatprep.subr.mxu0 0.0
        %584 = vmatpush1.msra.mxu0 0.0
        %585 = vmatprep.subr.mxu0 0.0
        %586 = vmatpush1.msra.mxu0 0.0
        %587 = vmatprep.subr.mxu0 0.0
        %588 = vmatpush1.msra.mxu0 0.0
        %589 = vmatprep.subr.mxu0 0.0
        %590 = vmatpush1.msra.mxu0 0.0
        %591 = vmatprep.subr.mxu0 0.0
        %592 = vmatpush1.msra.mxu0 0.0
        %593 = vmatprep.subr.mxu0 0.0
        %594 = vmatpush1.msra.mxu0 0.0
        %595 = vmatprep.mubr.f32.mxu0 0.0
        %596 = vmatmul.mubr.f32.gmra.mrb[0].mxu0 %v529
        %v597 = vpop.f32.mrb[0].mxu0
        %v598 = vadd.f32 0.0, %v597
        %v599 = vpop.f32.mrb[0].mxu0
        %600 = vdwg.mxu0
        %v601 = vmul.f32 %v379, 0.17677669
        %v602 = vmul.f32 %v452, 0.17677669
        %v603 = vmul.f32 %v525, 0.17677669
        %v604 = vmul.f32 %v598, 0.17677669
        %vm605 = vcmask 64512
        %v606 = vsel %vm605, %v601, -inf
        %607 = vmax.xlane.f32.xlu0 %v606
        %v608 = vpop.xlane.xlu0 %607
        %v609 = vsel %vm605, %v602, -inf
        %610 = vmax.xlane.f32.xlu0 %v609
        %v611 = vpop.xlane.xlu0 %610
        %v612 = vsel %vm605, %v603, -inf
        %613 = vmax.xlane.f32.xlu0 %v612
        %v614 = vpop.xlane.xlu0 %613
        %v615 = vsel %vm605, %v604, -inf
        %616 = vmax.xlane.f32.xlu0 %v615
        %v617 = vpop.xlane.xlu0 %616
        %v618 = vsub.f32 %v601, %v608
        %v619 = vsub.f32 %v602, %v611
        %v620 = vsub.f32 %v603, %v614
        %v621 = vsub.f32 %v604, %v617
        %v622 = vmul.f32 %v618, 1.442695
        %v623 = vpow.pop %v622
        %v624 = vmul.f32 %v619, 1.442695
        %v625 = vpow.pop %v624
        %v626 = vmul.f32 %v620, 1.442695
        %v627 = vpow.pop %v626
        %v628 = vmul.f32 %v621, 1.442695
        %v629 = vpow.pop %v628
        %v630 = vsel %vm605, %v623, 0.0
        %631 = vadd.xlane.f32.xlu0 %v630
        %v632 = vpop.xlane.xlu0 %631
        %v633 = vsel %vm605, %v625, 0.0
        %634 = vadd.xlane.f32.xlu0 %v633
        %v635 = vpop.xlane.xlu0 %634
        %v636 = vsel %vm605, %v627, 0.0
        %637 = vadd.xlane.f32.xlu0 %v636
        %v638 = vpop.xlane.xlu0 %637
        %v639 = vsel %vm605, %v629, 0.0
        %640 = vadd.xlane.f32.xlu0 %v639
        %v641 = vpop.xlane.xlu0 %640
        %v642 = vrcp.pop %v632
        %v643 = vrcp.pop %v635
        %v644 = vrcp.pop %v638
        %v645 = vrcp.pop %v641
        %v646 = vmul.f32 %v623, %v642
        %v647 = vmul.f32 %v625, %v643
        %v648 = vmul.f32 %v627, %v644
        %v649 = vmul.f32 %v629, %v645
        %650 = vst.msk [vmem:[%s260] sm:$0xff] %vm605, %v646
        %651 = vst.msk [vmem:[%s260 + $0x8] sm:$0xff] %vm605, %v647
        %652 = vst.msk [vmem:[%s260 + $0x10] sm:$0xff] %vm605, %v648
        %653 = vst.msk [vmem:[%s260 + $0x18] sm:$0xff] %vm605, %v649
        %v655 = vsel %vm605, %v646, 0
        %657 = vmatprep.subr.mxu0 0.0
        %658 = vmatpush1.msra.mxu0 %v304
        %659 = vmatprep.subr.mxu0 0.0
        %660 = vmatpush1.msra.mxu0 0.0
        %661 = vmatprep.subr.mxu0 0.0
        %662 = vmatpush1.msra.mxu0 0.0
        %663 = vmatprep.subr.mxu0 0.0
        %664 = vmatpush1.msra.mxu0 0.0
        %665 = vmatprep.subr.mxu0 0.0
        %666 = vmatpush1.msra.mxu0 0.0
        %667 = vmatprep.subr.mxu0 0.0
        %668 = vmatpush1.msra.mxu0 0.0
        %669 = vmatprep.subr.mxu0 0.0
        %670 = vmatpush1.msra.mxu0 0.0
        %671 = vmatprep.subr.mxu0 0.0
        %672 = vmatpush1.msra.mxu0 0.0
        %673 = vmatprep.subr.mxu0 0.0
        %674 = vmatpush1.msra.mxu0 0.0
        %675 = vmatprep.subr.mxu0 0.0
        %676 = vmatpush1.msra.mxu0 0.0
        %677 = vmatprep.subr.mxu0 0.0
        %678 = vmatpush1.msra.mxu0 0.0
        %679 = vmatprep.subr.mxu0 0.0
        %680 = vmatpush1.msra.mxu0 0.0
        %681 = vmatprep.subr.mxu0 0.0
        %682 = vmatpush1.msra.mxu0 0.0
        %683 = vmatprep.subr.mxu0 0.0
        %684 = vmatpush1.msra.mxu0 0.0
        %685 = vmatprep.subr.mxu0 0.0
        %686 = vmatpush1.msra.mxu0 0.0
        %687 = vmatprep.subr.mxu0 0.0
        %688 = vmatpush1.msra.mxu0 0.0
        %689 = vmatprep.subr.mxu0 0.0
        %690 = vmatpush1.msra.mxu0 0.0
        %691 = vmatprep.subr.mxu0 0.0
        %692 = vmatpush1.msra.mxu0 0.0
        %693 = vmatprep.subr.mxu0 0.0
        %694 = vmatpush1.msra.mxu0 0.0
        %695 = vmatprep.subr.mxu0 0.0
        %696 = vmatpush1.msra.mxu0 0.0
        %697 = vmatprep.subr.mxu0 0.0
        %698 = vmatpush1.msra.mxu0 0.0
        %699 = vmatprep.subr.mxu0 0.0
        %700 = vmatpush1.msra.mxu0 0.0
        %701 = vmatprep.subr.mxu0 0.0
        %702 = vmatpush1.msra.mxu0 0.0
        %703 = vmatprep.subr.mxu0 0.0
        %704 = vmatpush1.msra.mxu0 0.0
        %705 = vmatprep.subr.mxu0 0.0
        %706 = vmatpush1.msra.mxu0 0.0
        %707 = vmatprep.subr.mxu0 0.0
        %708 = vmatpush1.msra.mxu0 0.0
        %709 = vmatprep.subr.mxu0 0.0
        %710 = vmatpush1.msra.mxu0 0.0
        %711 = vmatprep.subr.mxu0 0.0
        %712 = vmatpush1.msra.mxu0 0.0
        %713 = vmatprep.subr.mxu0 0.0
        %714 = vmatpush1.msra.mxu0 0.0
        %715 = vmatprep.subr.mxu0 0.0
        %716 = vmatpush1.msra.mxu0 0.0
        %717 = vmatprep.subr.mxu0 0.0
        %718 = vmatpush1.msra.mxu0 0.0
        %719 = vmatprep.subr.mxu0 0.0
        %720 = vmatpush1.msra.mxu0 0.0
        %721 = vmatprep.mubr.f32.mxu0 0.0
        %722 = vmatmul.mubr.f32.gmra.mrb[0].mxu0 %v655
        %v723 = vpop.f32.mrb[0].mxu0
        %v724 = vadd.f32 0.0, %v723
        %v725 = vpop.f32.mrb[0].mxu0
        %726 = vdwg.mxu0
        %v728 = vsel %vm605, %v647, 0
        %730 = vmatprep.subr.mxu0 0.0
        %731 = vmatpush1.msra.mxu0 %v305
        %732 = vmatprep.subr.mxu0 0.0
        %733 = vmatpush1.msra.mxu0 0.0
        %734 = vmatprep.subr.mxu0 0.0
        %735 = vmatpush1.msra.mxu0 0.0
        %736 = vmatprep.subr.mxu0 0.0
        %737 = vmatpush1.msra.mxu0 0.0
        %738 = vmatprep.subr.mxu0 0.0
        %739 = vmatpush1.msra.mxu0 0.0
        %740 = vmatprep.subr.mxu0 0.0
        %741 = vmatpush1.msra.mxu0 0.0
        %742 = vmatprep.subr.mxu0 0.0
        %743 = vmatpush1.msra.mxu0 0.0
        %744 = vmatprep.subr.mxu0 0.0
        %745 = vmatpush1.msra.mxu0 0.0
        %746 = vmatprep.subr.mxu0 0.0
        %747 = vmatpush1.msra.mxu0 0.0
        %748 = vmatprep.subr.mxu0 0.0
        %749 = vmatpush1.msra.mxu0 0.0
        %750 = vmatprep.subr.mxu0 0.0
        %751 = vmatpush1.msra.mxu0 0.0
        %752 = vmatprep.subr.mxu0 0.0
        %753 = vmatpush1.msra.mxu0 0.0
        %754 = vmatprep.subr.mxu0 0.0
        %755 = vmatpush1.msra.mxu0 0.0
        %756 = vmatprep.subr.mxu0 0.0
        %757 = vmatpush1.msra.mxu0 0.0
        %758 = vmatprep.subr.mxu0 0.0
        %759 = vmatpush1.msra.mxu0 0.0
        %760 = vmatprep.subr.mxu0 0.0
        %761 = vmatpush1.msra.mxu0 0.0
        %762 = vmatprep.subr.mxu0 0.0
        %763 = vmatpush1.msra.mxu0 0.0
        %764 = vmatprep.subr.mxu0 0.0
        %765 = vmatpush1.msra.mxu0 0.0
        %766 = vmatprep.subr.mxu0 0.0
        %767 = vmatpush1.msra.mxu0 0.0
        %768 = vmatprep.subr.mxu0 0.0
        %769 = vmatpush1.msra.mxu0 0.0
        %770 = vmatprep.subr.mxu0 0.0
        %771 = vmatpush1.msra.mxu0 0.0
        %772 = vmatprep.subr.mxu0 0.0
        %773 = vmatpush1.msra.mxu0 0.0
        %774 = vmatprep.subr.mxu0 0.0
        %775 = vmatpush1.msra.mxu0 0.0
        %776 = vmatprep.subr.mxu0 0.0
        %777 = vmatpush1.msra.mxu0 0.0
        %778 = vmatprep.subr.mxu0 0.0
        %779 = vmatpush1.msra.mxu0 0.0
        %780 = vmatprep.subr.mxu0 0.0
        %781 = vmatpush1.msra.mxu0 0.0
        %782 = vmatprep.subr.mxu0 0.0
        %783 = vmatpush1.msra.mxu0 0.0
        %784 = vmatprep.subr.mxu0 0.0
        %785 = vmatpush1.msra.mxu0 0.0
        %786 = vmatprep.subr.mxu0 0.0
        %787 = vmatpush1.msra.mxu0 0.0
        %788 = vmatprep.subr.mxu0 0.0
        %789 = vmatpush1.msra.mxu0 0.0
        %790 = vmatprep.subr.mxu0 0.0
        %791 = vmatpush1.msra.mxu0 0.0
        %792 = vmatprep.subr.mxu0 0.0
        %793 = vmatpush1.msra.mxu0 0.0
        %794 = vmatprep.mubr.f32.mxu0 0.0
        %795 = vmatmul.mubr.f32.gmra.mrb[0].mxu0 %v728
        %v796 = vpop.f32.mrb[0].mxu0
        %v797 = vadd.f32 0.0, %v796
        %v798 = vpop.f32.mrb[0].mxu0
        %799 = vdwg.mxu0
        %v801 = vsel %vm605, %v648, 0
        %803 = vmatprep.subr.mxu0 0.0
        %804 = vmatpush1.msra.mxu0 %v306
        %805 = vmatprep.subr.mxu0 0.0
        %806 = vmatpush1.msra.mxu0 0.0
        %807 = vmatprep.subr.mxu0 0.0
        %808 = vmatpush1.msra.mxu0 0.0
        %809 = vmatprep.subr.mxu0 0.0
        %810 = vmatpush1.msra.mxu0 0.0
        %811 = vmatprep.subr.mxu0 0.0
        %812 = vmatpush1.msra.mxu0 0.0
        %813 = vmatprep.subr.mxu0 0.0
        %814 = vmatpush1.msra.mxu0 0.0
        %815 = vmatprep.subr.mxu0 0.0
        %816 = vmatpush1.msra.mxu0 0.0
        %817 = vmatprep.subr.mxu0 0.0
        %818 = vmatpush1.msra.mxu0 0.0
        %819 = vmatprep.subr.mxu0 0.0
        %820 = vmatpush1.msra.mxu0 0.0
        %821 = vmatprep.subr.mxu0 0.0
        %822 = vmatpush1.msra.mxu0 0.0
        %823 = vmatprep.subr.mxu0 0.0
        %824 = vmatpush1.msra.mxu0 0.0
        %825 = vmatprep.subr.mxu0 0.0
        %826 = vmatpush1.msra.mxu0 0.0
        %827 = vmatprep.subr.mxu0 0.0
        %828 = vmatpush1.msra.mxu0 0.0
        %829 = vmatprep.subr.mxu0 0.0
        %830 = vmatpush1.msra.mxu0 0.0
        %831 = vmatprep.subr.mxu0 0.0
        %832 = vmatpush1.msra.mxu0 0.0
        %833 = vmatprep.subr.mxu0 0.0
        %834 = vmatpush1.msra.mxu0 0.0
        %835 = vmatprep.subr.mxu0 0.0
        %836 = vmatpush1.msra.mxu0 0.0
        %837 = vmatprep.subr.mxu0 0.0
        %838 = vmatpush1.msra.mxu0 0.0
        %839 = vmatprep.subr.mxu0 0.0
        %840 = vmatpush1.msra.mxu0 0.0
        %841 = vmatprep.subr.mxu0 0.0
        %842 = vmatpush1.msra.mxu0 0.0
        %843 = vmatprep.subr.mxu0 0.0
        %844 = vmatpush1.msra.mxu0 0.0
        %845 = vmatprep.subr.mxu0 0.0
        %846 = vmatpush1.msra.mxu0 0.0
        %847 = vmatprep.subr.mxu0 0.0
        %848 = vmatpush1.msra.mxu0 0.0
        %849 = vmatprep.subr.mxu0 0.0
        %850 = vmatpush1.msra.mxu0 0.0
        %851 = vmatprep.subr.mxu0 0.0
        %852 = vmatpush1.msra.mxu0 0.0
        %853 = vmatprep.subr.mxu0 0.0
        %854 = vmatpush1.msra.mxu0 0.0
        %855 = vmatprep.subr.mxu0 0.0
        %856 = vmatpush1.msra.mxu0 0.0
        %857 = vmatprep.subr.mxu0 0.0
        %858 = vmatpush1.msra.mxu0 0.0
        %859 = vmatprep.subr.mxu0 0.0
        %860 = vmatpush1.msra.mxu0 0.0
        %861 = vmatprep.subr.mxu0 0.0
        %862 = vmatpush1.msra.mxu0 0.0
        %863 = vmatprep.subr.mxu0 0.0
        %864 = vmatpush1.msra.mxu0 0.0
        %865 = vmatprep.subr.mxu0 0.0
        %866 = vmatpush1.msra.mxu0 0.0
        %867 = vmatprep.mubr.f32.mxu0 0.0
        %868 = vmatmul.mubr.f32.gmra.mrb[0].mxu0 %v801
        %v869 = vpop.f32.mrb[0].mxu0
        %v870 = vadd.f32 0.0, %v869
        %v871 = vpop.f32.mrb[0].mxu0
        %872 = vdwg.mxu0
        %v874 = vsel %vm605, %v649, 0
        %876 = vmatprep.subr.mxu0 0.0
        %877 = vmatpush1.msra.mxu0 %v307
        %878 = vmatprep.subr.mxu0 0.0
        %879 = vmatpush1.msra.mxu0 0.0
        %880 = vmatprep.subr.mxu0 0.0
        %881 = vmatpush1.msra.mxu0 0.0
        %882 = vmatprep.subr.mxu0 0.0
        %883 = vmatpush1.msra.mxu0 0.0
        %884 = vmatprep.subr.mxu0 0.0
        %885 = vmatpush1.msra.mxu0 0.0
        %886 = vmatprep.subr.mxu0 0.0
        %887 = vmatpush1.msra.mxu0 0.0
        %888 = vmatprep.subr.mxu0 0.0
        %889 = vmatpush1.msra.mxu0 0.0
        %890 = vmatprep.subr.mxu0 0.0
        %891 = vmatpush1.msra.mxu0 0.0
        %892 = vmatprep.subr.mxu0 0.0
        %893 = vmatpush1.msra.mxu0 0.0
        %894 = vmatprep.subr.mxu0 0.0
        %895 = vmatpush1.msra.mxu0 0.0
        %896 = vmatprep.subr.mxu0 0.0
        %897 = vmatpush1.msra.mxu0 0.0
        %898 = vmatprep.subr.mxu0 0.0
        %899 = vmatpush1.msra.mxu0 0.0
        %900 = vmatprep.subr.mxu0 0.0
        %901 = vmatpush1.msra.mxu0 0.0
        %902 = vmatprep.subr.mxu0 0.0
        %903 = vmatpush1.msra.mxu0 0.0
        %904 = vmatprep.subr.mxu0 0.0
        %905 = vmatpush1.msra.mxu0 0.0
        %906 = vmatprep.subr.mxu0 0.0
        %907 = vmatpush1.msra.mxu0 0.0
        %908 = vmatprep.subr.mxu0 0.0
        %909 = vmatpush1.msra.mxu0 0.0
        %910 = vmatprep.subr.mxu0 0.0
        %911 = vmatpush1.msra.mxu0 0.0
        %912 = vmatprep.subr.mxu0 0.0
        %913 = vmatpush1.msra.mxu0 0.0
        %914 = vmatprep.subr.mxu0 0.0
        %915 = vmatpush1.msra.mxu0 0.0
        %916 = vmatprep.subr.mxu0 0.0
        %917 = vmatpush1.msra.mxu0 0.0
        %918 = vmatprep.subr.mxu0 0.0
        %919 = vmatpush1.msra.mxu0 0.0
        %920 = vmatprep.subr.mxu0 0.0
        %921 = vmatpush1.msra.mxu0 0.0
        %922 = vmatprep.subr.mxu0 0.0
        %923 = vmatpush1.msra.mxu0 0.0
        %924 = vmatprep.subr.mxu0 0.0
        %925 = vmatpush1.msra.mxu0 0.0
        %926 = vmatprep.subr.mxu0 0.0
        %927 = vmatpush1.msra.mxu0 0.0
        %928 = vmatprep.subr.mxu0 0.0
        %929 = vmatpush1.msra.mxu0 0.0
        %930 = vmatprep.subr.mxu0 0.0
        %931 = vmatpush1.msra.mxu0 0.0
        %932 = vmatprep.subr.mxu0 0.0
        %933 = vmatpush1.msra.mxu0 0.0
        %934 = vmatprep.subr.mxu0 0.0
        %935 = vmatpush1.msra.mxu0 0.0
        %936 = vmatprep.subr.mxu0 0.0
        %937 = vmatpush1.msra.mxu0 0.0
        %938 = vmatprep.subr.mxu0 0.0
        %939 = vmatpush1.msra.mxu0 0.0
        %940 = vmatprep.mubr.f32.mxu0 0.0
        %941 = vmatmul.mubr.f32.gmra.mrb[0].mxu0 %v874
        %v942 = vpop.f32.mrb[0].mxu0
        %v943 = vadd.f32 0.0, %v942
        %v944 = vpop.f32.mrb[0].mxu0
        %945 = vdwg.mxu0
        %v946 = vcombine.low %v724, %v870
        %v947 = vcombine.high %v724, %v870
        %v949 = vunpack.c.l.s4 1983009808
        %v950 = vunpack.c.0.s8 %v949
        %v951 = vlaneseq
        %v952 = vshrl.u32 %v951, 7
        %v953 = vsub.s32 %v950, %v952
        %v954 = vrot.slane %v946, %v953
        %v956 = vunpack.c.l.s4 1983009808
        %v957 = vunpack.c.0.s8 %v956
        %v958 = vlaneseq
        %v959 = vshrl.u32 %v958, 7
        %v960 = vsub.s32 %v957, %v959
        %v961 = vrot.slane %v947, %v960
        %v962 = vcombine.low %v797, %v943
        %v963 = vcombine.high %v797, %v943
        %v965 = vunpack.c.l.s4 1983009808
        %v966 = vunpack.c.0.s8 %v965
        %v967 = vlaneseq
        %v968 = vshrl.u32 %v967, 7
        %v969 = vsub.s32 %v966, %v968
        %v970 = vrot.slane %v962, %v969
        %v972 = vunpack.c.l.s4 1983009808
        %v973 = vunpack.c.0.s8 %v972
        %v974 = vlaneseq
        %v975 = vshrl.u32 %v974, 7
        %v976 = vsub.s32 %v973, %v975
        %v977 = vrot.slane %v963, %v976
        %v978 = vcombine.low %v954, %v970
        %v979 = vcombine.high %v954, %v970
        %v981 = vunpack.c.l.s4 1934713408
        %v982 = vunpack.c.0.s8 %v981
        %v983 = vlaneseq
        %v984 = vshrl.u32 %v983, 7
        %v985 = vsub.s32 %v982, %v984
        %v986 = vrot.slane %v978, %v985
        %v988 = vunpack.c.l.s4 1934713408
        %v989 = vunpack.c.0.s8 %v988
        %v990 = vlaneseq
        %v991 = vshrl.u32 %v990, 7
        %v992 = vsub.s32 %v989, %v991
        %v993 = vrot.slane %v979, %v992
        %v994 = vcombine.low %v961, %v977
        %v995 = vcombine.high %v961, %v977
        %v997 = vunpack.c.l.s4 1934713408
        %v998 = vunpack.c.0.s8 %v997
        %v999 = vlaneseq
        %v1000 = vshrl.u32 %v999, 7
        %v1001 = vsub.s32 %v998, %v1000
        %v1002 = vrot.slane %v994, %v1001
        %v1004 = vunpack.c.l.s4 1934713408
        %v1005 = vunpack.c.0.s8 %v1004
        %v1006 = vlaneseq
        %v1007 = vshrl.u32 %v1006, 7
        %v1008 = vsub.s32 %v1005, %v1007
        %v1009 = vrot.slane %v995, %v1008
        %v1010 = vcombine.high %v986, 0.0
        %v1011 = vcombine.high %v993, 0.0
        %v1012 = vcombine.high %v1002, 0.0
        %v1013 = vcombine.high %v1009, 0.0
        %v1014 = vcombine.low %v986, %v993
        %v1016 = vunpack.c.l.s4 1983009808
        %v1017 = vunpack.c.0.s8 %v1016
        %v1018 = vlaneseq
        %v1019 = vshrl.u32 %v1018, 7
        %v1020 = vsub.s32 %v1017, %v1019
        %v1021 = vrot.slane %v1014, %v1020
        %v1022 = vcombine.low %v1010, %v1011
        %v1024 = vunpack.c.l.s4 1983009808
        %v1025 = vunpack.c.0.s8 %v1024
        %v1026 = vlaneseq
        %v1027 = vshrl.u32 %v1026, 7
        %v1028 = vsub.s32 %v1025, %v1027
        %v1029 = vrot.slane %v1022, %v1028
        %v1030 = vcombine.low %v1002, %v1009
        %v1032 = vunpack.c.l.s4 1983009808
        %v1033 = vunpack.c.0.s8 %v1032
        %v1034 = vlaneseq
        %v1035 = vshrl.u32 %v1034, 7
        %v1036 = vsub.s32 %v1033, %v1035
        %v1037 = vrot.slane %v1030, %v1036
        %v1038 = vcombine.low %v1012, %v1013
        %v1040 = vunpack.c.l.s4 1983009808
        %v1041 = vunpack.c.0.s8 %v1040
        %v1042 = vlaneseq
        %v1043 = vshrl.u32 %v1042, 7
        %v1044 = vsub.s32 %v1041, %v1043
        %v1045 = vrot.slane %v1038, %v1044
        %v1046 = vcombine.low %v1021, %v1029
        %v1047 = vcombine.high %v1021, %v1029
        %v1049 = vunpack.c.l.s4 1934713408
        %v1050 = vunpack.c.0.s8 %v1049
        %v1051 = vlaneseq
        %v1052 = vshrl.u32 %v1051, 7
        %v1053 = vsub.s32 %v1050, %v1052
        %v1054 = vrot.slane %v1046, %v1053
        %v1056 = vunpack.c.l.s4 1934713408
        %v1057 = vunpack.c.0.s8 %v1056
        %v1058 = vlaneseq
        %v1059 = vshrl.u32 %v1058, 7
        %v1060 = vsub.s32 %v1057, %v1059
        %v1061 = vrot.slane %v1047, %v1060
        %v1062 = vcombine.low %v1037, %v1045
        %v1063 = vcombine.high %v1037, %v1045
        %v1065 = vunpack.c.l.s4 1934713408
        %v1066 = vunpack.c.0.s8 %v1065
        %v1067 = vlaneseq
        %v1068 = vshrl.u32 %v1067, 7
        %v1069 = vsub.s32 %v1066, %v1068
        %v1070 = vrot.slane %v1062, %v1069
        %v1072 = vunpack.c.l.s4 1934713408
        %v1073 = vunpack.c.0.s8 %v1072
        %v1074 = vlaneseq
        %v1075 = vshrl.u32 %v1074, 7
        %v1076 = vsub.s32 %v1073, %v1075
        %v1077 = vrot.slane %v1063, %v1076
        %v1078 = vcombine.low %v1054, %v1070
        %v1079 = vcombine.high %v1054, %v1070
        %v1080 = vcombine.low %v1061, %v1077
        %v1081 = vcombine.high %v1061, %v1077
        %1083 = vrot.lane.b32.xlu0 %v1079, 32
        %v1084 = vpop.permute.xlu0 %1083
        %1087 = vrot.lane.b32.xlu0 %v1080, 64
        %v1088 = vpop.permute.xlu0 %1087
        %1091 = vrot.lane.b32.xlu0 %v1081, 96
        %v1092 = vpop.permute.xlu0 %1091
        %v1094 = vsel %vm308, %v1078, %v1084
        %vm1095 = vcmask 523264
        %v1096 = vsel %vm1095, %v1094, %v1088
        %vm1097 = vcmask 785408
        %v1098 = vsel %vm1097, %v1096, %v1092
        %1099 = vst [vmem:[%s253] sm:$0xff] %v1098
        %s1100 = sand.u32 %s124, 1
        %s1101 = scalar_lea.sflag [#allocation3], %s1100
        %s1102 = sand.u32 %s124, 1
        %s1103 = smul.addr %s1102, 8
        %s1104 = scalar_lea.vmem [#allocation2], %s1103
        %s1105 = sand.u32 %s152, 1
        %s1106 = scalar_lea.sflag [#allocation5], %s1105
        %s1107 = sand.u32 %s152, 1
        %s1108 = smul.addr %s1107, 32
        %s1109 = scalar_lea.vmem [#allocation4], %s1108
        // Predicated region
        $region33: #{tpu_custom_call.1} parent=31 // pred_check
          %p1110 = pneg %p134
        $region34: #{tpu_custom_call.1} parent=31 // pred_check_branch
          %1112 = sbr.rel (%p1110) target = $region36
        $region35: #{tpu_custom_call.1} parent=31 // pred_region
          %s1114 = ssub.s32 128, 128
          %1115 = vsyncadd %s1101, %s1114
          %s1116 = sadd.s32 %s27, %s26
          %s1117 = smul.addr %s1116, 128
          %s1118 = scalar_lea.hbm %s3, %s1117
          %s1120 = sshll.u32 %s1104, 4
          %s1121 = int_to_ptr.vmem [resolvable:$true] %s1120
          %1123 = dma.vmem_to_hbm [thread:$0]  %s1121, 128, %s1118, %s1101
        $region36: #{tpu_custom_call.1} parent=31 // pred_fallthru
          _
        // Predicated region
        $region37: #{tpu_custom_call.1} parent=31 // pred_check
          %p1124 = pneg %p162
        $region38: #{tpu_custom_call.1} parent=31 // pred_check_branch
          %1126 = sbr.rel (%p1124) target = $region40
        $region39: #{tpu_custom_call.1} parent=31 // pred_region
          %s1127 = smul.u32 4, %s26
          %s1129 = ssub.s32 512, 512
          %1130 = vsyncadd %s1106, %s1129
          %s1131 = sadd.s32 %s27, %s1127
          %s1132 = smul.addr %s1131, 128
          %s1133 = scalar_lea.hbm %s4, %s1132
          %s1134 = sshll.u32 %s1109, 4
          %s1135 = int_to_ptr.vmem [resolvable:$true] %s1134
          %1140 = dma.vmem_to_hbm [thread:$0]  %s1135, 512, %s1133, %s1106, 128, 128, 8
        $region40: #{tpu_custom_call.1} parent=31 // pred_fallthru
          _
      $region32: #{tpu_custom_call.1} parent=5 // pred_fallthru
        _
      %p1141 = scmp.le.s32.totalorder 2, %s17
      // Predicated region
      $region41: #{tpu_custom_call.1} parent=5 // pred_check
        %p1142 = pneg %p1141
      $region42: #{tpu_custom_call.1} parent=5 // pred_check_branch
        %1144 = sbr.rel (%p1142) target = $region44
      $region43: #{tpu_custom_call.1} parent=5 // pred_region
        %s1145 = ssub.s32 %s17, 2
        // Predicated region
        $region45: #{tpu_custom_call.1} parent=43 // pred_check
          %p1146 = pneg %p140
        $region46: #{tpu_custom_call.1} parent=43 // pred_check_branch
          %1148 = sbr.rel (%p1146) target = $region48
        $region47: #{tpu_custom_call.1} parent=43 // pred_region
          %s1149 = sand.u32 %s125, 1
          %s1150 = scalar_lea.sflag [#allocation3], %s1149
          %s1151 = sand.u32 %s125, 1
          %s1152 = smul.addr %s1151, 8
          %s1153 = scalar_lea.vmem [#allocation2], %s1152
          %1154 = dma.done %s1150, 128
        $region48: #{tpu_custom_call.1} parent=43 // pred_fallthru
          _
        // Predicated region
        $region49: #{tpu_custom_call.1} parent=43 // pred_check
          %p1155 = pneg %p168
        $region50: #{tpu_custom_call.1} parent=43 // pred_check_branch
          %1157 = sbr.rel (%p1155) target = $region52
        $region51: #{tpu_custom_call.1} parent=43 // pred_region
          %s1158 = sand.u32 %s153, 1
          %s1159 = scalar_lea.sflag [#allocation5], %s1158
          %s1160 = sand.u32 %s153, 1
          %s1161 = smul.addr %s1160, 32
          %s1162 = scalar_lea.vmem [#allocation4], %s1161
          %1163 = dma.done %s1159, 512
        $region52: #{tpu_custom_call.1} parent=43 // pred_fallthru
          _
      $region44: #{tpu_custom_call.1} parent=5 // pred_fallthru
        _
    $region6: #{tpu_custom_call.1} parent=1 // loop_footer
      %s21 = sadd.s32 1, %s17
    $region7: #{tpu_custom_call.1} parent=1 // loop_footer_branch
      %16 = sbr.rel target = $region3
    $region8: #{tpu_custom_call.1} parent=1 // loop_exit
      _
    %1164 = vsyncpa [#allocation3], 1
    %s1165 = scalar_lea.sflag [#allocation3], 1
    %1166 = vsyncpa %s1165, 1
    %1167 = vsyncpa [#allocation5], 1
    %s1168 = scalar_lea.sflag [#allocation5], 1
    %1169 = vsyncpa %s1168, 1

</llo_original>
